<compile_context>
chip_gen: v7x
topology: tpu7x:2x2x1
jax: 0.10.0
libtpu: 0.0.40
codegen_flags: <defaults>
</compile_context>

<pallas_src>
import functools

import jax
import jax.numpy as jnp
from jax.experimental import pallas as pl
from jax.experimental.pallas import tpu as pltpu


def _round_up(x, m):
    return (x + m - 1) // m * m


def _ffnet_kernel(x_ref, w0_ref, wr_ref, b_ref, o_ref, h_ref, *,
                  layer_count, compute_dtype):
    """All layers fused. h_ref: [tm, P] f32 VMEM scratch holding activations."""
    # layer 0: y = x @ W0 + b0   (f32 accumulate, f32 bias/ReLU epilogue)
    x = x_ref[...].astype(compute_dtype)
    y = jnp.dot(x, w0_ref[...], preferred_element_type=jnp.float32) + b_ref[0]

    if layer_count == 1:
        o_ref[...] = y.astype(o_ref.dtype)
        return

    h_ref[...] = jnp.maximum(y, 0.0)

    for l in range(1, layer_count):            # static, unrolled layer loop
        h = h_ref[...].astype(compute_dtype)
        y = jnp.dot(h, wr_ref[l - 1],
                    preferred_element_type=jnp.float32) + b_ref[l]
        if l < layer_count - 1:
            h_ref[...] = jnp.maximum(y, 0.0)   # ReLU in f32 (v5e-safe)
        else:
            o_ref[...] = y.astype(o_ref.dtype)


def ffnet_forward(params, x, *, compute_dtype=jnp.float32):
    """params: list of (w [in,out], b [out]) f32; x: [B, ...]. Returns [B, outputs]."""
    layer_count = len(params)
    B = x.shape[0]
    x = x.reshape(B, -1).astype(jnp.float32)       # x.view(-1, num_flat_features)
    fin = x.shape[1]
    fouts = [w.shape[1] for (w, _) in params]
    outputs = fouts[-1]

    # lane-dense padded feature widths
    P_in = _round_up(fin, 128)
    P = _round_up(max(fouts), 128)

    # sublane-aligned batch tiling; "parallel" grid axis over row tiles
    tm = 256 if B >= 256 else _round_up(B, 8)
    M = _round_up(B, tm)

    # --- pad + pack (zero padding keeps the math exact) ---------------------
    x_pad = jnp.zeros((M, P_in), jnp.float32).at[:B, :fin].set(x)
    x_pad = x_pad.astype(compute_dtype)

    w0, b0 = params[0]
    w0_pad = jnp.zeros((P_in, P), jnp.float32)
    w0_pad = w0_pad.at[:w0.shape[0], :w0.shape[1]].set(w0).astype(compute_dtype)

    n_rest = max(layer_count - 1, 1)
    wr_pad = jnp.zeros((n_rest, P, P), jnp.float32)
    b_pad = jnp.zeros((layer_count, 1, P), jnp.float32)
    b_pad = b_pad.at[0, 0, :b0.shape[0]].set(b0)
    for l in range(1, layer_count):
        w, b = params[l]
        wr_pad = wr_pad.at[l - 1, :w.shape[0], :w.shape[1]].set(w)
        b_pad = b_pad.at[l, 0, :b.shape[0]].set(b)
    wr_pad = wr_pad.astype(compute_dtype)

    kernel = functools.partial(_ffnet_kernel, layer_count=layer_count,
                               compute_dtype=compute_dtype)

    out = pl.pallas_call(
        kernel,
        out_shape=jax.ShapeDtypeStruct((M, P), jnp.float32),
        grid_spec=pltpu.PrefetchScalarGridSpec(
            num_scalar_prefetch=0,
            grid=(M // tm,),
            in_specs=[
                pl.BlockSpec((tm, P_in), lambda i: (i, 0)),            # x tile
                pl.BlockSpec((P_in, P), lambda i: (0, 0)),             # W0 (resident)
                pl.BlockSpec((n_rest, P, P), lambda i: (0, 0, 0)),     # W1..L-1 (resident)
                pl.BlockSpec((layer_count, 1, P), lambda i: (0, 0, 0)),  # biases (resident)
            ],
            out_specs=pl.BlockSpec((tm, P), lambda i: (i, 0)),
            scratch_shapes=[pltpu.VMEM((tm, P), jnp.float32)],
        ),
        compiler_params=pltpu.CompilerParams(
            dimension_semantics=("parallel",),   # shards row tiles across v7x's 2 TCs
        ),
    )(x_pad, w0_pad, wr_pad, b_pad)

    return out[:B, :outputs]


def init_ffnet_params(key, inputs, outputs, layer_units, layer_count):
    """Deterministic init mimicking nn.Linear's U(-1/sqrt(fan_in), 1/sqrt(fan_in))."""
    dims = [inputs] + [layer_units] * (layer_count - 1) + [outputs]
    params = []
    for i in range(layer_count):
        fan_in, fan_out = dims[i], dims[i + 1]
        key, kw, kb = jax.random.split(key, 3)
        bound = 1.0 / jnp.sqrt(jnp.float32(fan_in))
        # stored as [in, out] (transposed from PyTorch's [out, in])
        w = jax.random.uniform(kw, (fan_in, fan_out), jnp.float32, -bound, bound)
        b = jax.random.uniform(kb, (fan_out,), jnp.float32, -bound, bound)
        params.append((w, b))
    return params


if __name__ == "__main__":
    key = jax.random.PRNGKey(0)
    k_x, k_p = jax.random.split(key)

    batch, C, H, W = 2, 4, 4, 4
    inputs = C * H * W          # 64
    layer_units = 32
    outputs = 8
    layer_count = 3

    x = jax.random.normal(k_x, (batch, C, H, W), jnp.float32)
    params = init_ffnet_params(k_p, inputs, outputs, layer_units, layer_count)

    # f32 path (exact) and bf16-MXU path (f32 accumulate + epilogue)
    fwd_f32 = jax.jit(functools.partial(ffnet_forward, compute_dtype=jnp.float32))
    fwd_bf16 = jax.jit(functools.partial(ffnet_forward, compute_dtype=jnp.bfloat16))
    out_f32 = jax.block_until_ready(fwd_f32(params, x))
    out_bf16 = jax.block_until_ready(fwd_bf16(params, x))

    # pure-JAX references (same dtype path as each kernel variant)
    def ref_fwd(params, x, dt):
        h = x.reshape(x.shape[0], -1)
        for (w, b) in params[:-1]:
            h = jnp.maximum(
                jnp.dot(h.astype(dt), w.astype(dt),
                        preferred_element_type=jnp.float32) + b, 0.0)
        w, b = params[-1]
        return jnp.dot(h.astype(dt), w.astype(dt),
                       preferred_element_type=jnp.float32) + b

    ref32 = ref_fwd(params, x, jnp.float32)
    ref16 = ref_fwd(params, x, jnp.bfloat16)

    assert out_f32.shape == (batch, outputs)
    assert jnp.allclose(out_f32, ref32, atol=1e-5, rtol=1e-5)
    assert jnp.allclose(out_bf16, ref16, atol=1e-2, rtol=1e-2)

    print("KERNEL_OK")
</pallas_src>

<mosaic_0001>
module attributes {stable_mosaic.version = 11 : i64} {
  func.func @_ffnet_kernel(%arg0: i32, %arg1: memref<8x128xf32, #tpu.memory_space<vmem>>, %arg2: memref<128x128xf32, #tpu.memory_space<vmem>>, %arg3: memref<2x128x128xf32, #tpu.memory_space<vmem>>, %arg4: memref<3x1x128xf32, #tpu.memory_space<vmem>>, %arg5: memref<8x128xf32, #tpu.memory_space<vmem>>, %arg6: memref<8x128xf32, #tpu.memory_space<vmem>>) attributes {dimension_semantics = [#tpu.dimension_semantics<parallel>], iteration_bounds = array<i64: 1>, scalar_prefetch = 0 : i64, scratch_operands = 1 : i64, tpu.core_type = #tpu.core_type<tc>, window_params = [{transform_indices = @transform_0, window_bounds = array<i64: 8, 128>}, {pipeline_mode = #tpu.pipeline_mode<synchronous>, transform_indices = @transform_1, window_bounds = array<i64: 128, 128>}, {pipeline_mode = #tpu.pipeline_mode<synchronous>, transform_indices = @transform_2, window_bounds = array<i64: 2, 128, 128>}, {pipeline_mode = #tpu.pipeline_mode<synchronous>, transform_indices = @transform_3, window_bounds = array<i64: 3, 1, 128>}, {transform_indices = @transform_4, window_bounds = array<i64: 8, 128>}]} {
    %c0 = arith.constant 0 : index
    %c0_0 = arith.constant 0 : index
    %0 = vector.load %arg1[%c0, %c0_0] : memref<8x128xf32, #tpu.memory_space<vmem>>, vector<8x128xf32>
    %c0_1 = arith.constant 0 : index
    %c0_2 = arith.constant 0 : index
    %1 = vector.load %arg2[%c0_1, %c0_2] : memref<128x128xf32, #tpu.memory_space<vmem>>, vector<128x128xf32>
    %cst = arith.constant dense<0.000000e+00> : vector<8x128xf32>
    %2 = tpu.matmul %0, %1, %cst {dimension_numbers = #tpu.dot_dimension_numbers<[1], [0], [0], [1], [0, 0, 1, 1], [], []>} : vector<8x128xf32>, vector<128x128xf32>, vector<8x128xf32> -> vector<8x128xf32>
    %c0_3 = arith.constant 0 : index
    %c0_4 = arith.constant 0 : index
    %c0_5 = arith.constant 0 : index
    %3 = vector.load %arg4[%c0_3, %c0_4, %c0_5] : memref<3x1x128xf32, #tpu.memory_space<vmem>>, vector<1x1x128xf32>
    %4 = vector.shape_cast %3 : vector<1x1x128xf32> to vector<1x128xf32>
    %5 = vector.broadcast %4 : vector<1x128xf32> to vector<8x128xf32>
    %6 = arith.addf %2, %5 : vector<8x128xf32>
    %cst_6 = arith.constant 0.000000e+00 : f32
    %7 = vector.broadcast %cst_6 : f32 to vector<8x128xf32>
    %8 = arith.maximumf %6, %7 : vector<8x128xf32>
    %c0_7 = arith.constant 0 : index
    %c0_8 = arith.constant 0 : index
    %9 = vector.load %arg6[%c0_7, %c0_8] : memref<8x128xf32, #tpu.memory_space<vmem>>, vector<8x128xf32>
    tpu.vector_store %arg6[%c0_7, %c0_8], %8 {strides = array<i32>} : memref<8x128xf32, #tpu.memory_space<vmem>>, vector<8x128xf32>,
    %c0_9 = arith.constant 0 : index
    %c0_10 = arith.constant 0 : index
    %10 = vector.load %arg6[%c0_9, %c0_10] : memref<8x128xf32, #tpu.memory_space<vmem>>, vector<8x128xf32>
    %c0_11 = arith.constant 0 : index
    %c0_12 = arith.constant 0 : index
    %c0_13 = arith.constant 0 : index
    %11 = vector.load %arg3[%c0_11, %c0_12, %c0_13] : memref<2x128x128xf32, #tpu.memory_space<vmem>>, vector<1x128x128xf32>
    %12 = vector.shape_cast %11 : vector<1x128x128xf32> to vector<128x128xf32>
    %cst_14 = arith.constant dense<0.000000e+00> : vector<8x128xf32>
    %13 = tpu.matmul %10, %12, %cst_14 {dimension_numbers = #tpu.dot_dimension_numbers<[1], [0], [0], [1], [0, 0, 1, 1], [], []>} : vector<8x128xf32>, vector<128x128xf32>, vector<8x128xf32> -> vector<8x128xf32>
    %c1 = arith.constant 1 : index
    %c0_15 = arith.constant 0 : index
    %c0_16 = arith.constant 0 : index
    %14 = vector.load %arg4[%c1, %c0_15, %c0_16] : memref<3x1x128xf32, #tpu.memory_space<vmem>>, vector<1x1x128xf32>
    %15 = vector.shape_cast %14 : vector<1x1x128xf32> to vector<1x128xf32>
    %16 = vector.broadcast %15 : vector<1x128xf32> to vector<8x128xf32>
    %17 = arith.addf %13, %16 : vector<8x128xf32>
    %cst_17 = arith.constant 0.000000e+00 : f32
    %18 = vector.broadcast %cst_17 : f32 to vector<8x128xf32>
    %19 = arith.maximumf %17, %18 : vector<8x128xf32>
    %c0_18 = arith.constant 0 : index
    %c0_19 = arith.constant 0 : index
    %20 = vector.load %arg6[%c0_18, %c0_19] : memref<8x128xf32, #tpu.memory_space<vmem>>, vector<8x128xf32>
    tpu.vector_store %arg6[%c0_18, %c0_19], %19 {strides = array<i32>} : memref<8x128xf32, #tpu.memory_space<vmem>>, vector<8x128xf32>,
    %c0_20 = arith.constant 0 : index
    %c0_21 = arith.constant 0 : index
    %21 = vector.load %arg6[%c0_20, %c0_21] : memref<8x128xf32, #tpu.memory_space<vmem>>, vector<8x128xf32>
    %c1_22 = arith.constant 1 : index
    %c0_23 = arith.constant 0 : index
    %c0_24 = arith.constant 0 : index
    %22 = vector.load %arg3[%c1_22, %c0_23, %c0_24] : memref<2x128x128xf32, #tpu.memory_space<vmem>>, vector<1x128x128xf32>
    %23 = vector.shape_cast %22 : vector<1x128x128xf32> to vector<128x128xf32>
    %cst_25 = arith.constant dense<0.000000e+00> : vector<8x128xf32>
    %24 = tpu.matmul %21, %23, %cst_25 {dimension_numbers = #tpu.dot_dimension_numbers<[1], [0], [0], [1], [0, 0, 1, 1], [], []>} : vector<8x128xf32>, vector<128x128xf32>, vector<8x128xf32> -> vector<8x128xf32>
    %c2 = arith.constant 2 : index
    %c0_26 = arith.constant 0 : index
    %c0_27 = arith.constant 0 : index
    %25 = vector.load %arg4[%c2, %c0_26, %c0_27] : memref<3x1x128xf32, #tpu.memory_space<vmem>>, vector<1x1x128xf32>
    %26 = vector.shape_cast %25 : vector<1x1x128xf32> to vector<1x128xf32>
    %27 = vector.broadcast %26 : vector<1x128xf32> to vector<8x128xf32>
    %28 = arith.addf %24, %27 : vector<8x128xf32>
    %c0_28 = arith.constant 0 : index
    %c0_29 = arith.constant 0 : index
    %29 = vector.load %arg5[%c0_28, %c0_29] : memref<8x128xf32, #tpu.memory_space<vmem>>, vector<8x128xf32>
    tpu.vector_store %arg5[%c0_28, %c0_29], %28 {strides = array<i32>} : memref<8x128xf32, #tpu.memory_space<vmem>>, vector<8x128xf32>,
    return
  }
  func.func @transform_0(%arg0: i32) -> (i32, i32) {
    %c0_i32 = arith.constant 0 : i32
    %c0_i32_0 = arith.constant 0 : i32
    return %arg0, %c0_i32 : i32, i32
  }
  func.func @transform_1(%arg0: i32) -> (i32, i32) {
    %c0_i32 = arith.constant 0 : i32
    %c0_i32_0 = arith.constant 0 : i32
    %c0_i32_1 = arith.constant 0 : i32
    return %c0_i32, %c0_i32_0 : i32, i32
  }
  func.func @transform_2(%arg0: i32) -> (i32, i32, i32) {
    %c0_i32 = arith.constant 0 : i32
    %c0_i32_0 = arith.constant 0 : i32
    %c0_i32_1 = arith.constant 0 : i32
    %c0_i32_2 = arith.constant 0 : i32
    return %c0_i32, %c0_i32_0, %c0_i32_1 : i32, i32, i32
  }
  func.func @transform_3(%arg0: i32) -> (i32, i32, i32) {
    %c0_i32 = arith.constant 0 : i32
    %c0_i32_0 = arith.constant 0 : i32
    %c0_i32_1 = arith.constant 0 : i32
    %c0_i32_2 = arith.constant 0 : i32
    return %c0_i32, %c0_i32_0, %c0_i32_1 : i32, i32, i32
  }
  func.func @transform_4(%arg0: i32) -> (i32, i32) {
    %c0_i32 = arith.constant 0 : i32
    %c0_i32_0 = arith.constant 0 : i32
    return %arg0, %c0_i32 : i32, i32
  }
}

</mosaic_0001>

<llo_original>
// kernel: ffnet_forward.1
$region0: #{ffnet_forward.1}
  #allocation0 [shape = 'u32[]', space=smem, size = 0x4, offset = 0x4, fixed_abs, tag = 'smem constant byte address 0x4 - core index']
  #allocation1 [shape = 'u32[144,128]{1,0:T(1,128)}', space=vmem, size = 0x12000, scoped, tag = 'internal scratch']
  #allocation2 [shape = 'f32[8,128]{1,0:T(8,128)}', space=vmem, size = 0x1000, scoped, tag = 'scratch operand']
  %s0 = inlined_call_operand.vmem [shape: f32[8,128], index: 0, kind: input, shape index: {}]
  %s1 = inlined_call_operand.vmem [shape: f32[128,128], index: 1, kind: input, shape index: {}]
  %s2 = inlined_call_operand.vmem [shape: f32[2,128,128], index: 2, kind: input, shape index: {}]
  %s3 = inlined_call_operand.vmem [shape: f32[3,1,128], index: 3, kind: input, shape index: {}]
  %s4 = inlined_call_operand.vmem [shape: f32[8,128], index: 4, kind: output, shape index: {}]
  %s5 = sld [smem:[#allocation0]]
  $region26: #{ffnet_forward.1} parent=0
    _
  %s7 = ssub.s32 1, %s5
  %s8 = scalar_select 0, %s7, %s5
  // Predicated region
  $region2: #{ffnet_forward.1} parent=0 // pred_check
    _
  $region3: #{ffnet_forward.1} parent=0 // pred_check_branch
    %10 = sbr.rel (0) target = $region5
  $region4: #{ffnet_forward.1} parent=0 // pred_region
    _
  $region5: #{ffnet_forward.1} parent=0 // pred_fallthru
    _
  // Predicated region
  $region6: #{ffnet_forward.1} parent=0 // pred_check
    _
  $region7: #{ffnet_forward.1} parent=0 // pred_check_branch
    %12 = sbr.rel (0) target = $region9
  $region8: #{ffnet_forward.1} parent=0 // pred_region
    _
  $region9: #{ffnet_forward.1} parent=0 // pred_fallthru
    _
  // Predicated region
  $region10: #{ffnet_forward.1} parent=0 // pred_check
    _
  $region11: #{ffnet_forward.1} parent=0 // pred_check_branch
    %14 = sbr.rel (0) target = $region13
  $region12: #{ffnet_forward.1} parent=0 // pred_region
    _
  $region13: #{ffnet_forward.1} parent=0 // pred_fallthru
    _
  // Predicated region
  $region14: #{ffnet_forward.1} parent=0 // pred_check
    _
  $region15: #{ffnet_forward.1} parent=0 // pred_check_branch
    %16 = sbr.rel (0) target = $region17
  $region16: #{ffnet_forward.1} parent=0 // pred_region
    _
  $region17: #{ffnet_forward.1} parent=0 // pred_fallthru
    _
  %v17 = vld [vmem:[%s0] sm:$0xff]
  %v18 = vld [vmem:[%s1] sm:$0xff]
  %v19 = vld [vmem:[%s1 + $0x8] sm:$0xff]
  %v20 = vld [vmem:[%s1 + $0x10] sm:$0xff]
  %v21 = vld [vmem:[%s1 + $0x18] sm:$0xff]
  %v22 = vld [vmem:[%s1 + $0x20] sm:$0xff]
  %v23 = vld [vmem:[%s1 + $0x28] sm:$0xff]
  %v24 = vld [vmem:[%s1 + $0x30] sm:$0xff]
  %v25 = vld [vmem:[%s1 + $0x38] sm:$0xff]
  %v26 = vld [vmem:[%s1 + $0x40] sm:$0xff]
  %v27 = vld [vmem:[%s1 + $0x48] sm:$0xff]
  %v28 = vld [vmem:[%s1 + $0x50] sm:$0xff]
  %v29 = vld [vmem:[%s1 + $0x58] sm:$0xff]
  %v30 = vld [vmem:[%s1 + $0x60] sm:$0xff]
  %v31 = vld [vmem:[%s1 + $0x68] sm:$0xff]
  %v32 = vld [vmem:[%s1 + $0x70] sm:$0xff]
  %v33 = vld [vmem:[%s1 + $0x78] sm:$0xff]
  %v34 = vld [vmem:[%s3] sm:$0x1]
  %v36 = vlaneseq
  %v37 = vshrl.u32 %v36, 7
  %v38 = vsub.s32 0, %v37
  %v39 = vrot.slane %v34, %v38
  %41 = vmatprep.subr.mxu0 0.0
  %42 = vmatpush1.msra.mxu0 %v18
  %43 = vmatprep.subr.mxu0 0.0
  %44 = vmatpush1.msra.mxu0 %v19
  %45 = vmatprep.subr.mxu0 0.0
  %46 = vmatpush1.msra.mxu0 %v20
  %47 = vmatprep.subr.mxu0 0.0
  %48 = vmatpush1.msra.mxu0 %v21
  %49 = vmatprep.subr.mxu0 0.0
  %50 = vmatpush1.msra.mxu0 %v22
  %51 = vmatprep.subr.mxu0 0.0
  %52 = vmatpush1.msra.mxu0 %v23
  %53 = vmatprep.subr.mxu0 0.0
  %54 = vmatpush1.msra.mxu0 %v24
  %55 = vmatprep.subr.mxu0 0.0
  %56 = vmatpush1.msra.mxu0 %v25
  %57 = vmatprep.subr.mxu0 0.0
  %58 = vmatpush1.msra.mxu0 %v26
  %59 = vmatprep.subr.mxu0 0.0
  %60 = vmatpush1.msra.mxu0 %v27
  %61 = vmatprep.subr.mxu0 0.0
  %62 = vmatpush1.msra.mxu0 %v28
  %63 = vmatprep.subr.mxu0 0.0
  %64 = vmatpush1.msra.mxu0 %v29
  %65 = vmatprep.subr.mxu0 0.0
  %66 = vmatpush1.msra.mxu0 %v30
  %67 = vmatprep.subr.mxu0 0.0
  %68 = vmatpush1.msra.mxu0 %v31
  %69 = vmatprep.subr.mxu0 0.0
  %70 = vmatpush1.msra.mxu0 %v32
  %71 = vmatprep.subr.mxu0 0.0
  %72 = vmatpush1.msra.mxu0 %v33
  %73 = vmatprep.subr.mxu0 0.0
  %74 = vmatpush1.msra.mxu0 0.0
  %75 = vmatprep.subr.mxu0 0.0
  %76 = vmatpush1.msra.mxu0 0.0
  %77 = vmatprep.subr.mxu0 0.0
  %78 = vmatpush1.msra.mxu0 0.0
  %79 = vmatprep.subr.mxu0 0.0
  %80 = vmatpush1.msra.mxu0 0.0
  %81 = vmatprep.subr.mxu0 0.0
  %82 = vmatpush1.msra.mxu0 0.0
  %83 = vmatprep.subr.mxu0 0.0
  %84 = vmatpush1.msra.mxu0 0.0
  %85 = vmatprep.subr.mxu0 0.0
  %86 = vmatpush1.msra.mxu0 0.0
  %87 = vmatprep.subr.mxu0 0.0
  %88 = vmatpush1.msra.mxu0 0.0
  %89 = vmatprep.subr.mxu0 0.0
  %90 = vmatpush1.msra.mxu0 0.0
  %91 = vmatprep.subr.mxu0 0.0
  %92 = vmatpush1.msra.mxu0 0.0
  %93 = vmatprep.subr.mxu0 0.0
  %94 = vmatpush1.msra.mxu0 0.0
  %95 = vmatprep.subr.mxu0 0.0
  %96 = vmatpush1.msra.mxu0 0.0
  %97 = vmatprep.subr.mxu0 0.0
  %98 = vmatpush1.msra.mxu0 0.0
  %99 = vmatprep.subr.mxu0 0.0
  %100 = vmatpush1.msra.mxu0 0.0
  %101 = vmatprep.subr.mxu0 0.0
  %102 = vmatpush1.msra.mxu0 0.0
  %103 = vmatprep.subr.mxu0 0.0
  %104 = vmatpush1.msra.mxu0 0.0
  %105 = vmatprep.mubr.f32.mxu0 0.0
  %106 = vmatmul.mubr.f32.gmra.mrb[0].mxu0 %v17
  %v107 = vpop.f32.mrb[0].mxu0
  %v108 = vadd.f32 %v39, %v107
  %v109 = vpop.f32.mrb[0].mxu0
  %110 = vdwg.mxu0
  %v111 = vmax.f32 %v108, 0.0
  %112 = vst [vmem:[#allocation2] sm:$0xff] %v111
  %v113 = vld [vmem:[#allocation2] sm:$0xff]
  %v114 = vld [vmem:[%s2] sm:$0xff]
  %v115 = vld [vmem:[%s2 + $0x8] sm:$0xff]
  %v116 = vld [vmem:[%s2 + $0x10] sm:$0xff]
  %v117 = vld [vmem:[%s2 + $0x18] sm:$0xff]
  %v118 = vld [vmem:[%s2 + $0x20] sm:$0xff]
  %v119 = vld [vmem:[%s2 + $0x28] sm:$0xff]
  %v120 = vld [vmem:[%s2 + $0x30] sm:$0xff]
  %v121 = vld [vmem:[%s2 + $0x38] sm:$0xff]
  %v122 = vld [vmem:[%s2 + $0x40] sm:$0xff]
  %v123 = vld [vmem:[%s2 + $0x48] sm:$0xff]
  %v124 = vld [vmem:[%s2 + $0x50] sm:$0xff]
  %v125 = vld [vmem:[%s2 + $0x58] sm:$0xff]
  %v126 = vld [vmem:[%s2 + $0x60] sm:$0xff]
  %v127 = vld [vmem:[%s2 + $0x68] sm:$0xff]
  %v128 = vld [vmem:[%s2 + $0x70] sm:$0xff]
  %v129 = vld [vmem:[%s2 + $0x78] sm:$0xff]
  %s130 = scalar_lea.vmem %s3, 1
  %v131 = vld [vmem:[%s130] sm:$0x1]
  %v133 = vlaneseq
  %v134 = vshrl.u32 %v133, 7
  %v135 = vsub.s32 0, %v134
  %v136 = vrot.slane %v131, %v135
  %138 = vmatprep.subr.mxu0 0.0
  %139 = vmatpush1.msra.mxu0 %v114
  %140 = vmatprep.subr.mxu0 0.0
  %141 = vmatpush1.msra.mxu0 %v115
  %142 = vmatprep.subr.mxu0 0.0
  %143 = vmatpush1.msra.mxu0 %v116
  %144 = vmatprep.subr.mxu0 0.0
  %145 = vmatpush1.msra.mxu0 %v117
  %146 = vmatprep.subr.mxu0 0.0
  %147 = vmatpush1.msra.mxu0 %v118
  %148 = vmatprep.subr.mxu0 0.0
  %149 = vmatpush1.msra.mxu0 %v119
  %150 = vmatprep.subr.mxu0 0.0
  %151 = vmatpush1.msra.mxu0 %v120
  %152 = vmatprep.subr.mxu0 0.0
  %153 = vmatpush1.msra.mxu0 %v121
  %154 = vmatprep.subr.mxu0 0.0
  %155 = vmatpush1.msra.mxu0 %v122
  %156 = vmatprep.subr.mxu0 0.0
  %157 = vmatpush1.msra.mxu0 %v123
  %158 = vmatprep.subr.mxu0 0.0
  %159 = vmatpush1.msra.mxu0 %v124
  %160 = vmatprep.subr.mxu0 0.0
  %161 = vmatpush1.msra.mxu0 %v125
  %162 = vmatprep.subr.mxu0 0.0
  %163 = vmatpush1.msra.mxu0 %v126
  %164 = vmatprep.subr.mxu0 0.0
  %165 = vmatpush1.msra.mxu0 %v127
  %166 = vmatprep.subr.mxu0 0.0
  %167 = vmatpush1.msra.mxu0 %v128
  %168 = vmatprep.subr.mxu0 0.0
  %169 = vmatpush1.msra.mxu0 %v129
  %170 = vmatprep.subr.mxu0 0.0
  %171 = vmatpush1.msra.mxu0 0.0
  %172 = vmatprep.subr.mxu0 0.0
  %173 = vmatpush1.msra.mxu0 0.0
  %174 = vmatprep.subr.mxu0 0.0
  %175 = vmatpush1.msra.mxu0 0.0
  %176 = vmatprep.subr.mxu0 0.0
  %177 = vmatpush1.msra.mxu0 0.0
  %178 = vmatprep.subr.mxu0 0.0
  %179 = vmatpush1.msra.mxu0 0.0
  %180 = vmatprep.subr.mxu0 0.0
  %181 = vmatpush1.msra.mxu0 0.0
  %182 = vmatprep.subr.mxu0 0.0
  %183 = vmatpush1.msra.mxu0 0.0
  %184 = vmatprep.subr.mxu0 0.0
  %185 = vmatpush1.msra.mxu0 0.0
  %186 = vmatprep.subr.mxu0 0.0
  %187 = vmatpush1.msra.mxu0 0.0
  %188 = vmatprep.subr.mxu0 0.0
  %189 = vmatpush1.msra.mxu0 0.0
  %190 = vmatprep.subr.mxu0 0.0
  %191 = vmatpush1.msra.mxu0 0.0
  %192 = vmatprep.subr.mxu0 0.0
  %193 = vmatpush1.msra.mxu0 0.0
  %194 = vmatprep.subr.mxu0 0.0
  %195 = vmatpush1.msra.mxu0 0.0
  %196 = vmatprep.subr.mxu0 0.0
  %197 = vmatpush1.msra.mxu0 0.0
  %198 = vmatprep.subr.mxu0 0.0
  %199 = vmatpush1.msra.mxu0 0.0
  %200 = vmatprep.subr.mxu0 0.0
  %201 = vmatpush1.msra.mxu0 0.0
  %202 = vmatprep.mubr.f32.mxu0 0.0
  %203 = vmatmul.mubr.f32.gmra.mrb[0].mxu0 %v113
  %v204 = vpop.f32.mrb[0].mxu0
  %v205 = vadd.f32 %v136, %v204
  %v206 = vpop.f32.mrb[0].mxu0
  %207 = vdwg.mxu0
  %v208 = vmax.f32 %v205, 0.0
  %209 = vst [vmem:[#allocation2] sm:$0xff] %v208
  %v210 = vld [vmem:[#allocation2] sm:$0xff]
  %s211 = scalar_lea.vmem %s2, 128
  %v212 = vld [vmem:[%s211] sm:$0xff]
  %v213 = vld [vmem:[%s211 + $0x8] sm:$0xff]
  %v214 = vld [vmem:[%s211 + $0x10] sm:$0xff]
  %v215 = vld [vmem:[%s211 + $0x18] sm:$0xff]
  %v216 = vld [vmem:[%s211 + $0x20] sm:$0xff]
  %v217 = vld [vmem:[%s211 + $0x28] sm:$0xff]
  %v218 = vld [vmem:[%s211 + $0x30] sm:$0xff]
  %v219 = vld [vmem:[%s211 + $0x38] sm:$0xff]
  %v220 = vld [vmem:[%s211 + $0x40] sm:$0xff]
  %v221 = vld [vmem:[%s211 + $0x48] sm:$0xff]
  %v222 = vld [vmem:[%s211 + $0x50] sm:$0xff]
  %v223 = vld [vmem:[%s211 + $0x58] sm:$0xff]
  %v224 = vld [vmem:[%s211 + $0x60] sm:$0xff]
  %v225 = vld [vmem:[%s211 + $0x68] sm:$0xff]
  %v226 = vld [vmem:[%s211 + $0x70] sm:$0xff]
  %v227 = vld [vmem:[%s211 + $0x78] sm:$0xff]
  %s228 = scalar_lea.vmem %s3, 2
  %v229 = vld [vmem:[%s228] sm:$0x1]
  %v231 = vlaneseq
  %v232 = vshrl.u32 %v231, 7
  %v233 = vsub.s32 0, %v232
  %v234 = vrot.slane %v229, %v233
  %236 = vmatprep.subr.mxu0 0.0
  %237 = vmatpush1.msra.mxu0 %v212
  %238 = vmatprep.subr.mxu0 0.0
  %239 = vmatpush1.msra.mxu0 %v213
  %240 = vmatprep.subr.mxu0 0.0
  %241 = vmatpush1.msra.mxu0 %v214
  %242 = vmatprep.subr.mxu0 0.0
  %243 = vmatpush1.msra.mxu0 %v215
  %244 = vmatprep.subr.mxu0 0.0
  %245 = vmatpush1.msra.mxu0 %v216
  %246 = vmatprep.subr.mxu0 0.0
  %247 = vmatpush1.msra.mxu0 %v217
  %248 = vmatprep.subr.mxu0 0.0
  %249 = vmatpush1.msra.mxu0 %v218
  %250 = vmatprep.subr.mxu0 0.0
  %251 = vmatpush1.msra.mxu0 %v219
  %252 = vmatprep.subr.mxu0 0.0
  %253 = vmatpush1.msra.mxu0 %v220
  %254 = vmatprep.subr.mxu0 0.0
  %255 = vmatpush1.msra.mxu0 %v221
  %256 = vmatprep.subr.mxu0 0.0
  %257 = vmatpush1.msra.mxu0 %v222
  %258 = vmatprep.subr.mxu0 0.0
  %259 = vmatpush1.msra.mxu0 %v223
  %260 = vmatprep.subr.mxu0 0.0
  %261 = vmatpush1.msra.mxu0 %v224
  %262 = vmatprep.subr.mxu0 0.0
  %263 = vmatpush1.msra.mxu0 %v225
  %264 = vmatprep.subr.mxu0 0.0
  %265 = vmatpush1.msra.mxu0 %v226
  %266 = vmatprep.subr.mxu0 0.0
  %267 = vmatpush1.msra.mxu0 %v227
  %268 = vmatprep.subr.mxu0 0.0
  %269 = vmatpush1.msra.mxu0 0.0
  %270 = vmatprep.subr.mxu0 0.0
  %271 = vmatpush1.msra.mxu0 0.0
  %272 = vmatprep.subr.mxu0 0.0
  %273 = vmatpush1.msra.mxu0 0.0
  %274 = vmatprep.subr.mxu0 0.0
  %275 = vmatpush1.msra.mxu0 0.0
  %276 = vmatprep.subr.mxu0 0.0
  %277 = vmatpush1.msra.mxu0 0.0
  %278 = vmatprep.subr.mxu0 0.0
  %279 = vmatpush1.msra.mxu0 0.0
  %280 = vmatprep.subr.mxu0 0.0
  %281 = vmatpush1.msra.mxu0 0.0
  %282 = vmatprep.subr.mxu0 0.0
  %283 = vmatpush1.msra.mxu0 0.0
  %284 = vmatprep.subr.mxu0 0.0
  %285 = vmatpush1.msra.mxu0 0.0
  %286 = vmatprep.subr.mxu0 0.0
  %287 = vmatpush1.msra.mxu0 0.0
  %288 = vmatprep.subr.mxu0 0.0
  %289 = vmatpush1.msra.mxu0 0.0
  %290 = vmatprep.subr.mxu0 0.0
  %291 = vmatpush1.msra.mxu0 0.0
  %292 = vmatprep.subr.mxu0 0.0
  %293 = vmatpush1.msra.mxu0 0.0
  %294 = vmatprep.subr.mxu0 0.0
  %295 = vmatpush1.msra.mxu0 0.0
  %296 = vmatprep.subr.mxu0 0.0
  %297 = vmatpush1.msra.mxu0 0.0
  %298 = vmatprep.subr.mxu0 0.0
  %299 = vmatpush1.msra.mxu0 0.0
  %300 = vmatprep.mubr.f32.mxu0 0.0
  %301 = vmatmul.mubr.f32.gmra.mrb[0].mxu0 %v210
  %v302 = vpop.f32.mrb[0].mxu0
  %v303 = vadd.f32 %v234, %v302
  %v304 = vpop.f32.mrb[0].mxu0
  %305 = vdwg.mxu0
  %306 = vst [vmem:[%s4] sm:$0xff] %v303
  // Predicated region
  $region18: #{ffnet_forward.1} parent=0 // pred_check
    _
  $region19: #{ffnet_forward.1} parent=0 // pred_check_branch
    %308 = sbr.rel (0) target = $region21
  $region20: #{ffnet_forward.1} parent=0 // pred_region
    _
  $region21: #{ffnet_forward.1} parent=0 // pred_fallthru
    _
  // Predicated region
  $region22: #{ffnet_forward.1} parent=0 // pred_check
    _
  $region23: #{ffnet_forward.1} parent=0 // pred_check_branch
    %310 = sbr.rel (0) target = $region25
  $region24: #{ffnet_forward.1} parent=0 // pred_region
    _
  $region25: #{ffnet_forward.1} parent=0 // pred_fallthru
    _

</llo_original>
